<compile_context>
chip_gen: v7x
topology: tpu7x:2x2x1
jax: 0.10.0
libtpu: 0.0.40
codegen_flags: <defaults>
</compile_context>

<pallas_src>
import functools

import jax
import jax.numpy as jnp
from jax import lax
from jax.experimental import pallas as pl
from jax.experimental.pallas import tpu as pltpu

LANES = 128
SUBLANES = 8


def _cdiv(a, b):
    return -(-a // b)


def _round_up(x, m):
    return _cdiv(x, m) * m


@functools.lru_cache(maxsize=1)
def _chip_kind():
    try:
        return jax.devices()[0].device_kind.lower()
    except Exception:
        return ""


def _rmse_ref(yhat, y, eps):
    d = yhat.astype(jnp.float32) - y.astype(jnp.float32)
    return jnp.sqrt(jnp.mean(d * d) + jnp.float32(eps))


def _rmse_partial_kernel(yhat_ref, y_ref, out_ref, *, rows, row_tile, fold_g,
                         nb_per_split, needs_mask, unroll):
    """Accumulates sum((yhat - y)^2) for this split into a (fold_g, 128) slab."""
    s = pl.program_id(0)
    j = pl.program_id(1)

    @pl.when(j == 0)
    def _init():
        out_ref[...] = jnp.zeros_like(out_ref)

    block_id = s * nb_per_split + j          # un-clamped logical block id
    row_start = block_id * row_tile

    def accumulate(masked):
        def body(i, acc):
            r0 = pl.multiple_of(i * fold_g, fold_g)
            a = yhat_ref[pl.ds(r0, fold_g), :].astype(jnp.float32)
            b = y_ref[pl.ds(r0, fold_g), :].astype(jnp.float32)
            d = a - b
            sq = d * d
            if masked:
                # Select (never multiply) so OOB garbage / NaN rows are dropped.
                rid = (row_start + i * fold_g
                       + lax.broadcasted_iota(jnp.int32, (fold_g, LANES), 0))
                sq = jnp.where(rid < rows, sq, 0.0)
            return acc + sq

        return lax.fori_loop(0, row_tile // fold_g, body,
                             jnp.zeros((fold_g, LANES), jnp.float32),
                             unroll=unroll)

    if needs_mask:
        # Only blocks that extend past `rows` (ragged edge or a clamped
        # duplicate grid cell) pay for the iota + compare + select.
        is_edge = row_start + row_tile > rows

        @pl.when(jnp.logical_not(is_edge))
        def _bulk():
            out_ref[...] += accumulate(False)

        @pl.when(is_edge)
        def _edge():
            out_ref[...] += accumulate(True)
    else:
        out_ref[...] += accumulate(False)


def rmse_loss(yhat, y, eps=1e-6, max_rows_per_block=None):
    assert yhat.shape == y.shape, "yhat and y must have the same shape"
    if yhat.dtype != y.dtype:
        cdt = jnp.promote_types(yhat.dtype, y.dtype)
        yhat, y = yhat.astype(cdt), y.astype(cdt)

    n = int(yhat.size)
    # Fallbacks: tiny inputs (kernel-launch overhead dominates) and element
    # counts not divisible by 128 (a lane-dense view would require a full-size
    # copy, costing more HBM traffic than XLA's own fused reduction).
    if n < SUBLANES * LANES or n % LANES != 0:
        return _rmse_ref(yhat, y, eps)

    itemsize = jnp.dtype(yhat.dtype).itemsize
    pack = max(1, 4 // itemsize)           # sublane packing factor of the dtype
    fold_g = SUBLANES * pack               # rows per vreg-slice in the fold loop

    kind = _chip_kind()
    two_cores = "v7" in kind                          # v7x: 2 TensorCores/chip
    base_rows = 8192 if ("v6" in kind or "v7" in kind) else 4096
    max_tile = max_rows_per_block if max_rows_per_block else base_rows * pack
    max_tile = max(fold_g, (max_tile // fold_g) * fold_g)

    rows = n // LANES                                 # zero-copy lane-dense view
    yhat2d = yhat.reshape(rows, LANES)
    y2d = y.reshape(rows, LANES)

    if rows <= max_tile:
        splits = 1
        row_tile = _round_up(rows, fold_g)
        nb_real = 1
    else:
        splits = 2 if two_cores else 1
        nb_target = splits * _cdiv(rows, splits * max_tile)
        row_tile = _round_up(_cdiv(rows, nb_target), fold_g)
        nb_real = _cdiv(rows, row_tile)               # no fully-OOB real blocks
    nb_per_split = _cdiv(nb_real, splits)
    needs_mask = (splits * nb_per_split * row_tile != rows)

    def in_map(s, j):
        # Clamp so a duplicate grid cell (odd nb_real with splits=2) never
        # issues a fully out-of-bounds DMA; its contribution is masked to 0
        # in-kernel via the un-clamped block id.
        return (jnp.minimum(s * nb_per_split + j, nb_real - 1), 0)

    kernel = functools.partial(
        _rmse_partial_kernel, rows=rows, row_tile=row_tile, fold_g=fold_g,
        nb_per_split=nb_per_split, needs_mask=needs_mask,
        unroll=min(8, max(1, row_tile // fold_g)))

    core_sem = getattr(pltpu, "CORE_PARALLEL", pltpu.PARALLEL)
    dim_sem = (core_sem if splits == 2 else pltpu.ARBITRARY, pltpu.ARBITRARY)

    partial_sums = pl.pallas_call(
        kernel,
        out_shape=jax.ShapeDtypeStruct((splits, fold_g, LANES), jnp.float32),
        grid_spec=pltpu.PrefetchScalarGridSpec(
            num_scalar_prefetch=0,
            grid=(splits, nb_per_split),
            in_specs=[
                pl.BlockSpec((row_tile, LANES), in_map),
                pl.BlockSpec((row_tile, LANES), in_map),
            ],
            out_specs=pl.BlockSpec((None, fold_g, LANES),
                                   lambda s, j: (s, 0, 0)),
        ),
        compiler_params=pltpu.CompilerParams(dimension_semantics=dim_sem),
        cost_estimate=pl.CostEstimate(
            flops=3 * n, transcendentals=0,
            bytes_accessed=2 * n * itemsize + splits * fold_g * LANES * 4),
    )(yhat2d, y2d)

    total = jnp.sum(partial_sums, dtype=jnp.float32)
    return jnp.sqrt(total / jnp.float32(n) + jnp.float32(eps))


if __name__ == "__main__":
    key = jax.random.PRNGKey(0)
    k1, k2, k3, k4, k5, k6 = jax.random.split(key, 6)

    # 1) Small NCHW autoencoder-style output/target (single exact block).
    yhat = jax.random.normal(k1, (2, 4, 16, 16), dtype=jnp.float32)
    y = jax.random.normal(k2, (2, 4, 16, 16), dtype=jnp.float32)
    loss = jax.block_until_ready(rmse_loss(yhat, y, eps=1e-6))
    ref = jnp.sqrt(jnp.mean((yhat - y) ** 2) + 1e-6)
    assert jnp.allclose(loss, ref, rtol=1e-5, atol=1e-6), (loss, ref)

    # 2) Ragged row count (2500 rows of 128) -> gated edge mask, still zero-copy.
    yhat2 = jax.random.normal(k3, (2, 4, 200, 200), dtype=jnp.float32)
    y2 = jax.random.normal(k4, (2, 4, 200, 200), dtype=jnp.float32)
    loss2 = jax.block_until_ready(rmse_loss(yhat2, y2, eps=1e-6))
    ref2 = jnp.sqrt(jnp.mean((yhat2 - y2) ** 2) + 1e-6)
    assert jnp.allclose(loss2, ref2, rtol=1e-5, atol=1e-6), (loss2, ref2)

    # 3) Small max_rows_per_block to exercise the multi-block accumulation path
    #    (resident output accumulator + masked edge block) without a big tensor.
    loss3 = jax.block_until_ready(
        rmse_loss(yhat2, y2, eps=1e-6, max_rows_per_block=512))
    assert jnp.allclose(loss3, ref2, rtol=1e-5, atol=1e-6), (loss3, ref2)

    # 4) bf16 inputs exercise the dtype-aware fold granularity / tile sizing.
    yhat4 = jax.random.normal(k5, (2, 4, 32, 32), dtype=jnp.bfloat16)
    y4 = jax.random.normal(k6, (2, 4, 32, 32), dtype=jnp.bfloat16)
    loss4 = jax.block_until_ready(rmse_loss(yhat4, y4, eps=1e-6))
    ref4 = jnp.sqrt(jnp.mean(
        (yhat4.astype(jnp.float32) - y4.astype(jnp.float32)) ** 2) + 1e-6)
    assert jnp.allclose(loss4, ref4, rtol=1e-4, atol=1e-5), (loss4, ref4)

    print("KERNEL_OK")
</pallas_src>

<mosaic_0001>
module attributes {stable_mosaic.version = 11 : i64} {
  func.func @_rmse_partial_kernel(%arg0: i32, %arg1: i32, %arg2: memref<16x128xf32, #tpu.memory_space<vmem>>, %arg3: memref<16x128xf32, #tpu.memory_space<vmem>>, %arg4: memref<1x8x128xf32, #tpu.memory_space<vmem>>) attributes {dimension_semantics = [#tpu.dimension_semantics<arbitrary>, #tpu.dimension_semantics<arbitrary>], iteration_bounds = array<i64: 1, 1>, scalar_prefetch = 0 : i64, scratch_operands = 0 : i64, tpu.core_type = #tpu.core_type<tc>, window_params = [{transform_indices = @transform_0, window_bounds = array<i64: 16, 128>}, {transform_indices = @transform_1, window_bounds = array<i64: 16, 128>}, {transform_indices = @transform_2, window_bounds = array<i64: 1, 8, 128>}]} {
    %c0_i32 = arith.constant 0 : i32
    %0 = arith.cmpi eq, %arg1, %c0_i32 : i32
    %1 = arith.extui %0 : i1 to i32
    %c0_i32_0 = arith.constant 0 : i32
    %2 = arith.cmpi ne, %1, %c0_i32_0 : i32
    scf.if %2 {
      %cst_12 = arith.constant 0.000000e+00 : f32
      %28 = vector.broadcast %cst_12 : f32 to vector<8x128xf32>
      %c0_13 = arith.constant 0 : index
      %c0_14 = arith.constant 0 : index
      %c0_15 = arith.constant 0 : index
      %29 = vector.load %arg4[%c0_13, %c0_14, %c0_15] : memref<1x8x128xf32, #tpu.memory_space<vmem>>, vector<1x8x128xf32>
      %30 = vector.shape_cast %29 : vector<1x8x128xf32> to vector<8x128xf32>
      %31 = vector.shape_cast %28 : vector<8x128xf32> to vector<1x8x128xf32>
      tpu.vector_store %arg4[%c0_13, %c0_14, %c0_15], %31 {strides = array<i32>} : memref<1x8x128xf32, #tpu.memory_space<vmem>>, vector<1x8x128xf32>,
    } else {
    }
    %c0 = arith.constant 0 : index
    %c0_1 = arith.constant 0 : index
    %c0_2 = arith.constant 0 : index
    %3 = vector.load %arg4[%c0, %c0_1, %c0_2] : memref<1x8x128xf32, #tpu.memory_space<vmem>>, vector<1x8x128xf32>
    %4 = vector.shape_cast %3 : vector<1x8x128xf32> to vector<8x128xf32>
    %cst = arith.constant 0.000000e+00 : f32
    %5 = vector.broadcast %cst : f32 to vector<8x128xf32>
    %c0_i32_3 = arith.constant 0 : i32
    %c8_i32 = arith.constant 8 : i32
    %6 = arith.muli %c0_i32_3, %c8_i32 : i32
    %7 = tpu.assume_multiple %6, 8 : i32
    %8 = arith.index_cast %7 : i32 to index
    %c0_4 = arith.constant 0 : index
    %9 = vector.load %arg2[%8, %c0_4] : memref<16x128xf32, #tpu.memory_space<vmem>>, vector<8x128xf32>
    %10 = arith.index_cast %7 : i32 to index
    %c0_5 = arith.constant 0 : index
    %11 = vector.load %arg3[%10, %c0_5] : memref<16x128xf32, #tpu.memory_space<vmem>>, vector<8x128xf32>
    %12 = arith.subf %9, %11 : vector<8x128xf32>
    %13 = arith.mulf %12, %12 : vector<8x128xf32>
    %14 = arith.addf %5, %13 : vector<8x128xf32>
    %c1_i32 = arith.constant 1 : i32
    %c8_i32_6 = arith.constant 8 : i32
    %15 = arith.muli %c1_i32, %c8_i32_6 : i32
    %16 = tpu.assume_multiple %15, 8 : i32
    %17 = arith.index_cast %16 : i32 to index
    %c0_7 = arith.constant 0 : index
    %18 = vector.load %arg2[%17, %c0_7] : memref<16x128xf32, #tpu.memory_space<vmem>>, vector<8x128xf32>
    %19 = arith.index_cast %16 : i32 to index
    %c0_8 = arith.constant 0 : index
    %20 = vector.load %arg3[%19, %c0_8] : memref<16x128xf32, #tpu.memory_space<vmem>>, vector<8x128xf32>
    %21 = arith.subf %18, %20 : vector<8x128xf32>
    %22 = arith.mulf %21, %21 : vector<8x128xf32>
    %23 = arith.addf %14, %22 : vector<8x128xf32>
    %c2_i32 = arith.constant 2 : i32
    %24 = arith.addf %4, %23 : vector<8x128xf32>
    %c0_9 = arith.constant 0 : index
    %c0_10 = arith.constant 0 : index
    %c0_11 = arith.constant 0 : index
    %25 = vector.load %arg4[%c0_9, %c0_10, %c0_11] : memref<1x8x128xf32, #tpu.memory_space<vmem>>, vector<1x8x128xf32>
    %26 = vector.shape_cast %25 : vector<1x8x128xf32> to vector<8x128xf32>
    %27 = vector.shape_cast %24 : vector<8x128xf32> to vector<1x8x128xf32>
    tpu.vector_store %arg4[%c0_9, %c0_10, %c0_11], %27 {strides = array<i32>} : memref<1x8x128xf32, #tpu.memory_space<vmem>>, vector<1x8x128xf32>,
    return
  }
  func.func @transform_0(%arg0: i32, %arg1: i32) -> (i32, i32) {
    %c1_i32 = arith.constant 1 : i32
    %0 = arith.muli %arg0, %c1_i32 : i32
    %1 = arith.addi %0, %arg1 : i32
    %c0_i32 = arith.constant 0 : i32
    %2 = arith.minsi %1, %c0_i32 : i32
    %c0_i32_0 = arith.constant 0 : i32
    %c0_i32_1 = arith.constant 0 : i32
    return %2, %c0_i32_0 : i32, i32
  }
  func.func @transform_1(%arg0: i32, %arg1: i32) -> (i32, i32) {
    %c1_i32 = arith.constant 1 : i32
    %0 = arith.muli %arg0, %c1_i32 : i32
    %1 = arith.addi %0, %arg1 : i32
    %c0_i32 = arith.constant 0 : i32
    %2 = arith.minsi %1, %c0_i32 : i32
    %c0_i32_0 = arith.constant 0 : i32
    %c0_i32_1 = arith.constant 0 : i32
    return %2, %c0_i32_0 : i32, i32
  }
  func.func @transform_2(%arg0: i32, %arg1: i32) -> (i32, i32, i32) {
    %c0_i32 = arith.constant 0 : i32
    %c0_i32_0 = arith.constant 0 : i32
    %c0_i32_1 = arith.constant 0 : i32
    return %arg0, %c0_i32, %c0_i32_0 : i32, i32, i32
  }
}

</mosaic_0001>

<llo_original>
// kernel: tpu_custom_call.1
$region0: #{tpu_custom_call.1}
  #allocation0 [shape = 'u32[]', space=smem, size = 0x4, offset = 0x4, fixed_abs, tag = 'smem constant byte address 0x4 - core index']
  #allocation1 [shape = 'u32[144,128]{1,0:T(1,128)}', space=vmem, size = 0x12000, scoped, tag = 'internal scratch']
  %s0 = inlined_call_operand.hbm [shape: f32[16,128], index: 0, kind: input, shape index: {}]
  %s1 = inlined_call_operand.hbm [shape: f32[16,128], index: 1, kind: input, shape index: {}]
  %s2 = inlined_call_operand.hbm [shape: f32[1,8,128], index: 2, kind: output, shape index: {}]
  %s3 = sld [smem:[#allocation0]]
  $region30: #{tpu_custom_call.1} parent=0
    _
  %s5 = ssub.s32 1, %s3
  %s6 = scalar_select 0, %s5, %s3
  $region1: #{tpu_custom_call.1} parent=0
    #allocation2 [shape = 'u8[8192]{0}', space=vmem, size = 0x2000, scoped, tag = 'input window, operand 0, single buffered']
    #allocation3 [shape = 's32[1]{0}', space=sflag, size = 0x4, scoped, tag = 'scoped memory for tpu_custom_call.1']
    #allocation4 [shape = 's32[1]{0}', space=sflag, size = 0x4, scoped, tag = 'scoped memory for tpu_custom_call.1']
    #allocation5 [shape = 'u8[8192]{0}', space=vmem, size = 0x2000, scoped, tag = 'input window, operand 1, single buffered']
    #allocation6 [shape = 's32[1]{0}', space=sflag, size = 0x4, scoped, tag = 'scoped memory for tpu_custom_call.1']
    #allocation7 [shape = 'u8[4096]{0}', space=vmem, size = 0x1000, scoped, tag = 'output window, operand 0, single buffered']
    %7 = vsyncpa [#allocation3], 0
    %8 = vsyncpa [#allocation6], 0
    %9 = vsyncpa [#allocation4], 0
    // Predicated region
    $region2: #{tpu_custom_call.1} parent=1 // pred_check
      _
    $region3: #{tpu_custom_call.1} parent=1 // pred_check_branch
      %11 = sbr.rel (0) target = $region5
    $region4: #{tpu_custom_call.1} parent=1 // pred_region
      %s12 = sadd.s32 0, 0
      %p13 = scmp.lt.s32.totalorder %s12, 0
      %s14 = scalar_select %p13, %s12, 0
      %s15 = smul.u32 2, %s14
      %s17 = ssub.s32 256, 256
      %18 = vsyncadd [#allocation3], %s17
      %s19 = smul.addr %s15, 128
      %s20 = scalar_lea.hbm %s0, %s19
      %s21 = sshll.u32 [#allocation2], 4
      %s22 = int_to_ptr.vmem [resolvable:$true] %s21
      %27 = dma.hbm_to_vmem [thread:$0]  %s20, 256, %s22, [#allocation3], 128, 128, 8
    $region5: #{tpu_custom_call.1} parent=1 // pred_fallthru
      _
    // Predicated region
    $region6: #{tpu_custom_call.1} parent=1 // pred_check
      _
    $region7: #{tpu_custom_call.1} parent=1 // pred_check_branch
      %29 = sbr.rel (0) target = $region9
    $region8: #{tpu_custom_call.1} parent=1 // pred_region
      %s30 = sadd.s32 0, 0
      %p31 = scmp.lt.s32.totalorder %s30, 0
      %s32 = scalar_select %p31, %s30, 0
      %s33 = smul.u32 2, %s32
      %s35 = ssub.s32 256, 256
      %36 = vsyncadd [#allocation6], %s35
      %s37 = smul.addr %s33, 128
      %s38 = scalar_lea.hbm %s1, %s37
      %s39 = sshll.u32 [#allocation5], 4
      %s40 = int_to_ptr.vmem [resolvable:$true] %s39
      %45 = dma.hbm_to_vmem [thread:$0]  %s38, 256, %s40, [#allocation6], 128, 128, 8
    $region9: #{tpu_custom_call.1} parent=1 // pred_fallthru
      _
    // Predicated region
    $region10: #{tpu_custom_call.1} parent=1 // pred_check
      _
    $region11: #{tpu_custom_call.1} parent=1 // pred_check_branch
      %47 = sbr.rel (0) target = $region13
    $region12: #{tpu_custom_call.1} parent=1 // pred_region
      %48 = dma.done [#allocation3], 256
    $region13: #{tpu_custom_call.1} parent=1 // pred_fallthru
      _
    // Predicated region
    $region14: #{tpu_custom_call.1} parent=1 // pred_check
      _
    $region15: #{tpu_custom_call.1} parent=1 // pred_check_branch
      %50 = sbr.rel (0) target = $region17
    $region16: #{tpu_custom_call.1} parent=1 // pred_region
      %51 = dma.done [#allocation6], 256
    $region17: #{tpu_custom_call.1} parent=1 // pred_fallthru
      _
    %s52 = sadd.s32 0, 0
    %p53 = scmp.lt.s32.totalorder %s52, 0
    %s54 = scalar_select %p53, %s52, 0
    %s55 = smul.u32 2, %s54
    %s56 = sadd.s32 0, 0
    %p57 = scmp.lt.s32.totalorder %s56, 0
    %s58 = scalar_select %p57, %s56, 0
    %s59 = smul.u32 2, %s58
    %p60 = scmp.eq.s32.totalorder 0, 0
    // Predicated region
    $region18: #{tpu_custom_call.1} parent=1 // pred_check
      %p61 = pneg %p60
    $region19: #{tpu_custom_call.1} parent=1 // pred_check_branch
      %63 = sbr.rel (%p61) target = $region21
    $region20: #{tpu_custom_call.1} parent=1 // pred_region
      %64 = vst [vmem:[#allocation7] sm:$0xff] 0.0
    $region21: #{tpu_custom_call.1} parent=1 // pred_fallthru
      _
    %v65 = vld [vmem:[#allocation7] sm:$0xff]
    %v66 = vld [vmem:[#allocation2] sm:$0xff]
    %v67 = vld [vmem:[#allocation5] sm:$0xff]
    %v68 = vsub.f32 %v66, %v67
    %v69 = vmul.f32 %v68, %v68
    %v70 = vadd.f32 %v69, 0.0
    %s71 = scalar_lea.vmem [#allocation2], 8
    %v72 = vld [vmem:[%s71] sm:$0xff]
    %s73 = scalar_lea.vmem [#allocation5], 8
    %v74 = vld [vmem:[%s73] sm:$0xff]
    %v75 = vsub.f32 %v72, %v74
    %v76 = vmul.f32 %v75, %v75
    %v77 = vadd.f32 %v70, %v76
    %v78 = vadd.f32 %v65, %v77
    %79 = vst [vmem:[#allocation7] sm:$0xff] %v78
    // Predicated region
    $region22: #{tpu_custom_call.1} parent=1 // pred_check
      _
    $region23: #{tpu_custom_call.1} parent=1 // pred_check_branch
      %81 = sbr.rel (0) target = $region25
    $region24: #{tpu_custom_call.1} parent=1 // pred_region
      %s83 = ssub.s32 128, 128
      %84 = vsyncadd [#allocation4], %s83
      %s86 = sshll.u32 [#allocation7], 4
      %s87 = int_to_ptr.vmem [resolvable:$true] %s86
      %89 = dma.vmem_to_hbm [thread:$0]  %s87, 128, %s2, [#allocation4]
    $region25: #{tpu_custom_call.1} parent=1 // pred_fallthru
      _
    // Predicated region
    $region26: #{tpu_custom_call.1} parent=1 // pred_check
      _
    $region27: #{tpu_custom_call.1} parent=1 // pred_check_branch
      %91 = sbr.rel (0) target = $region29
    $region28: #{tpu_custom_call.1} parent=1 // pred_region
      %92 = dma.done [#allocation4], 128
    $region29: #{tpu_custom_call.1} parent=1 // pred_fallthru
      _
    %93 = vsyncpa [#allocation3], 1
    %94 = vsyncpa [#allocation6], 1
    %95 = vsyncpa [#allocation4], 1

</llo_original>
